<compile_context>
chip_gen: v7x
topology: tpu7x:2x2x1
jax: 0.10.0
libtpu: 0.0.40
codegen_flags: <defaults>
</compile_context>

<pallas_src>
import functools

import jax
import jax.numpy as jnp
from jax.experimental import pallas as pl
from jax.experimental.pallas import tpu as pltpu

_N_PAD = 8  # lane padding of the probe-weight column so the dot stays a plain 2-D matmul


def reward_kernel(acts_ref, w_ref, b_ref, out_ref, acc_ref, *,
                  S_total, L_total, tS, mask_tail):
    """One grid step = one (batch row, probe layer, seq tile)."""
    l = pl.program_id(1)
    s = pl.program_id(2)
    n_l = pl.num_programs(1)
    n_s = pl.num_programs(2)

    @pl.when((l == 0) & (s == 0))
    def _init():
        acc_ref[...] = jnp.zeros_like(acc_ref)

    a2d = acts_ref[0, 0]            # (tS, H), streamed dtype (no upcast temporaries)
    w2d = w_ref[0]                  # (H, 8): probe weight in column 0, zeros elsewhere
    bias = b_ref[l]                 # scalar f32 from SMEM

    # Linear probe on the MXU (f32 accumulation); everything downstream is O(tS * 8).
    logits = jnp.dot(a2d, w2d, preferred_element_type=jnp.float32) + bias   # (tS, 8)
    scores = jax.nn.sigmoid(logits)                                         # probe.predict

    # Keep only column 0 (the real weight column); optionally mask padded tail seq rows.
    keep = jax.lax.broadcasted_iota(jnp.int32, scores.shape, 1) == 0
    if mask_tail:
        seq_pos = s * tS + jax.lax.broadcasted_iota(jnp.int32, scores.shape, 0)
        keep = keep & (seq_pos < S_total)
    # Mask AFTER the sigmoid: jnp.where selects 0.0 even if padded rows held junk.
    scores = jnp.where(keep, scores, 0.0)

    acc_ref[...] += jnp.sum(scores, axis=0, keepdims=True)     # (1, 8); lane 0 = real sum

    @pl.when((l == n_l - 1) & (s == n_s - 1))
    def _finalize():
        # mean over seq (torch dim=1) then mean over layers == sum / (S * L)
        total = jnp.sum(acc_ref[...], axis=1, keepdims=True)    # (1, 1)
        scale = 1.0 / (S_total * L_total)
        out_ref[...] = jnp.broadcast_to((total * scale)[None],
                                        out_ref.shape).astype(out_ref.dtype)


def _vmem_limit_bytes(estimate):
    """Scoped-VMEM request: at least 16 MiB, never more than ~80% of physical VMEM."""
    phys = 64 << 20  # conservative fallback = v7x per-TensorCore VMEM
    try:
        cap = getattr(pltpu.get_tpu_info(), "vmem_capacity_bytes", None)
        if cap:
            phys = int(cap)
    except Exception:
        pass
    ceiling = max(32 << 20, int(phys * 0.8))   # leave headroom for compiler scratch
    return int(min(max(estimate, 16 << 20), ceiling))


def reward_model2_forward(acts, probe_weights, probe_biases, *,
                          tS=None, block_bytes=4 << 20):
    """
    acts:          (L, B, S, H) residual activations per probe layer (any float dtype;
                   streamed to the kernel as-is, no wrapper dtype cast)
    probe_weights: (L, H) linear probe weights
    probe_biases:  (L, 1) linear probe biases
    returns:       (B,) float32 across-layer mean scores
    """
    L, B, S, H = acts.shape
    itemsize = jnp.dtype(acts.dtype).itemsize

    # Seq tile derived from H: one activation block ~= block_bytes, independent of the
    # hidden size.  Multiple of 8 (sublane rule), or the full S.
    if tS is None:
        tS = max(8, min(S, 1024, (block_bytes // (H * itemsize)) // 8 * 8))
    if tS >= S:
        tS = S
    elif tS % 8 != 0:
        tS = max(8, (tS // 8) * 8)
    ns = pl.cdiv(S, tS)
    mask_tail = (S % tS) != 0

    # Probe weights padded to (L, H, 8): column 0 holds the real weight.  Keeps the MXU
    # dot an always-legal 2-D matmul; per-layer fetch is only 8/S of the acts traffic.
    w_pad = jnp.zeros((L, H, _N_PAD), dtype=acts.dtype)
    w_pad = w_pad.at[:, :, 0].set(probe_weights.astype(acts.dtype))
    biases_f32 = probe_biases.reshape(L).astype(jnp.float32)

    kernel = functools.partial(reward_kernel, S_total=S, L_total=L, tS=tS,
                               mask_tail=mask_tail)

    acts_block = tS * H * itemsize
    w_block = H * _N_PAD * itemsize
    est = 2 * acts_block + 2 * w_block + (4 << 20)   # double buffers + spill/scratch slack
    vmem_limit = _vmem_limit_bytes(est)

    out = pl.pallas_call(
        kernel,
        out_shape=jax.ShapeDtypeStruct((B, 1, 128), jnp.float32),
        grid_spec=pltpu.PrefetchScalarGridSpec(
            num_scalar_prefetch=0,
            grid=(B, L, ns),
            in_specs=[
                # (1, 1, tS, H) activation block: one batch row, swept over layer & seq.
                pl.BlockSpec((1, 1, tS, H), lambda b, l, s: (l, b, s, 0)),
                # (1, H, 8) padded probe-weight column for the current layer.
                pl.BlockSpec((1, H, _N_PAD), lambda b, l, s: (l, 0, 0)),
                # Biases live in SMEM; read as scalars b_ref[l].
                pl.BlockSpec(memory_space=pltpu.MemorySpace.SMEM),
            ],
            # One disjoint, lane-dense (1, 1, 128) block per batch row (written once).
            out_specs=pl.BlockSpec((1, 1, 128), lambda b, l, s: (b, 0, 0)),
            scratch_shapes=[pltpu.VMEM((1, _N_PAD), jnp.float32)],
        ),
        compiler_params=pltpu.CompilerParams(
            # Batch rows are independent (megacore-shardable on v7x when B >= 2);
            # layer and seq are reduction axes into the VMEM accumulator.
            dimension_semantics=("parallel", "arbitrary", "arbitrary"),
            vmem_limit_bytes=vmem_limit,
        ),
    )(acts, w_pad, biases_f32)
    return out[:, 0, 0]


def reference_forward(acts, probe_weights, probe_biases):
    """Pure-JAX reference mirroring the PyTorch module (f32 throughout)."""
    logits = jnp.einsum("lbsh,lh->lbs", acts, probe_weights,
                        precision=jax.lax.Precision.HIGHEST)
    logits = logits + probe_biases[:, :, None]
    token_scores = jax.nn.sigmoid(logits)            # (L, B, S)
    layer_scores = jnp.mean(token_scores, axis=2)    # mean over seq (torch dim=1)
    return jnp.mean(layer_scores, axis=0)            # mean across layers -> (B,)


if __name__ == "__main__":
    key = jax.random.PRNGKey(0)
    k1, k2, k3, k4, k5, k6 = jax.random.split(key, 6)

    # --- Test 1: small shapes, single seq tile --------------------------------
    L, B, S, H = 3, 2, 8, 32   # probe layers, batch, seq (<= max_length), hidden
    acts = jax.random.normal(k1, (L, B, S, H), dtype=jnp.float32)
    probe_weights = jax.random.normal(k2, (L, H), dtype=jnp.float32) * 0.1
    probe_biases = jax.random.normal(k3, (L, 1), dtype=jnp.float32) * 0.1

    out = jax.block_until_ready(reward_model2_forward(acts, probe_weights, probe_biases))
    ref = reference_forward(acts, probe_weights, probe_biases)
    assert out.shape == (B,), out.shape
    assert jnp.allclose(out, ref, atol=2e-3, rtol=2e-3), (out, ref)

    # --- Test 2: seq tiling with a masked partial last tile -------------------
    L2, B2, S2, H2 = 2, 2, 20, 128
    acts2 = jax.random.normal(k4, (L2, B2, S2, H2), dtype=jnp.float32)
    w2 = jax.random.normal(k5, (L2, H2), dtype=jnp.float32) * 0.1
    b2 = jax.random.normal(k6, (L2, 1), dtype=jnp.float32) * 0.1

    out2 = jax.block_until_ready(reward_model2_forward(acts2, w2, b2, tS=8))  # 3 seq tiles
    ref2 = reference_forward(acts2, w2, b2)
    assert out2.shape == (B2,), out2.shape
    assert jnp.allclose(out2, ref2, atol=2e-3, rtol=2e-3), (out2, ref2)

    print("KERNEL_OK")
</pallas_src>

<mosaic_0001>
module attributes {stable_mosaic.version = 11 : i64} {
  func.func @reward_kernel(%arg0: i32, %arg1: i32, %arg2: i32, %arg3: memref<1x1x8x32xf32, #tpu.memory_space<vmem>>, %arg4: memref<1x32x8xf32, #tpu.memory_space<vmem>>, %arg5: memref<3xf32, #tpu.memory_space<smem>>, %arg6: memref<1x1x128xf32, #tpu.memory_space<vmem>>, %arg7: memref<1x8xf32, #tpu.memory_space<vmem>>) attributes {dimension_semantics = [#tpu.dimension_semantics<parallel>, #tpu.dimension_semantics<arbitrary>, #tpu.dimension_semantics<arbitrary>], iteration_bounds = array<i64: 2, 3, 1>, scalar_prefetch = 0 : i64, scratch_operands = 1 : i64, tpu.core_type = #tpu.core_type<tc>, window_params = [{transform_indices = @transform_0, window_bounds = array<i64: 1, 1, 8, 32>}, {transform_indices = @transform_1, window_bounds = array<i64: 1, 32, 8>}, {transform_indices = @transform_2, window_bounds = array<i64: 3>}, {transform_indices = @transform_3, window_bounds = array<i64: 1, 1, 128>}]} {
    %c0_i32 = arith.constant 0 : i32
    %0 = arith.cmpi eq, %arg1, %c0_i32 : i32
    %c0_i32_0 = arith.constant 0 : i32
    %1 = arith.cmpi eq, %arg2, %c0_i32_0 : i32
    %2 = arith.andi %0, %1 : i1
    %3 = arith.extui %2 : i1 to i32
    %c0_i32_1 = arith.constant 0 : i32
    %4 = arith.cmpi ne, %3, %c0_i32_1 : i32
    scf.if %4 {
      %cst_18 = arith.constant 0.000000e+00 : f32
      %34 = vector.broadcast %cst_18 : f32 to vector<1x8xf32>
      %c0_19 = arith.constant 0 : index
      %c0_20 = arith.constant 0 : index
      %35 = vector.load %arg7[%c0_19, %c0_20] : memref<1x8xf32, #tpu.memory_space<vmem>>, vector<1x8xf32>
      tpu.vector_store %arg7[%c0_19, %c0_20], %34 {strides = array<i32>} : memref<1x8xf32, #tpu.memory_space<vmem>>, vector<1x8xf32>,
    } else {
    }
    %c0 = arith.constant 0 : index
    %c0_2 = arith.constant 0 : index
    %c0_3 = arith.constant 0 : index
    %c0_4 = arith.constant 0 : index
    %5 = vector.load %arg3[%c0, %c0_2, %c0_3, %c0_4] : memref<1x1x8x32xf32, #tpu.memory_space<vmem>>, vector<1x1x8x32xf32>
    %6 = vector.shape_cast %5 : vector<1x1x8x32xf32> to vector<8x32xf32>
    %c0_5 = arith.constant 0 : index
    %c0_6 = arith.constant 0 : index
    %c0_7 = arith.constant 0 : index
    %7 = vector.load %arg4[%c0_5, %c0_6, %c0_7] : memref<1x32x8xf32, #tpu.memory_space<vmem>>, vector<1x32x8xf32>
    %8 = vector.shape_cast %7 : vector<1x32x8xf32> to vector<32x8xf32>
    %9 = arith.index_cast %arg1 : i32 to index
    %10 = memref.load %arg5[%9] : memref<3xf32, #tpu.memory_space<smem>>
    %cst = arith.constant dense<0.000000e+00> : vector<8x8xf32>
    %11 = tpu.matmul %6, %8, %cst {dimension_numbers = #tpu.dot_dimension_numbers<[1], [0], [0], [1], [0, 0, 1, 1], [], []>} : vector<8x32xf32>, vector<32x8xf32>, vector<8x8xf32> -> vector<8x8xf32>
    %12 = vector.broadcast %10 : f32 to vector<8x8xf32>
    %13 = arith.addf %11, %12 : vector<8x8xf32>
    %14 = arith.negf %13 : vector<8x8xf32>
    %15 = math.exp %14 : vector<8x8xf32>
    %cst_8 = arith.constant 1.000000e+00 : f32
    %16 = vector.broadcast %cst_8 : f32 to vector<8x8xf32>
    %17 = arith.addf %16, %15 : vector<8x8xf32>
    %18 = arith.divf %16, %17 : vector<8x8xf32>
    %19 = tpu.iota {dimensions = array<i32: 1>} : vector<8x8xi32>
    %c0_i32_9 = arith.constant 0 : i32
    %20 = vector.broadcast %c0_i32_9 : i32 to vector<8x8xi32>
    %21 = arith.cmpi eq, %19, %20 : vector<8x8xi32>
    %cst_10 = arith.constant 0.000000e+00 : f32
    %22 = vector.broadcast %cst_10 : f32 to vector<8x8xf32>
    %23 = arith.select %21, %18, %22 : vector<8x8xi1>, vector<8x8xf32>
    %c0_11 = arith.constant 0 : index
    %c0_12 = arith.constant 0 : index
    %24 = vector.load %arg7[%c0_11, %c0_12] : memref<1x8xf32, #tpu.memory_space<vmem>>, vector<1x8xf32>
    %cst_13 = arith.constant dense<0.000000e+00> : vector<8xf32>
    %25 = vector.multi_reduction <add>, %23, %cst_13 [0] : vector<8x8xf32> to vector<8xf32>
    %26 = vector.shape_cast %25 : vector<8xf32> to vector<1x8xf32>
    %27 = arith.addf %24, %26 : vector<1x8xf32>
    %c0_14 = arith.constant 0 : index
    %c0_15 = arith.constant 0 : index
    %28 = vector.load %arg7[%c0_14, %c0_15] : memref<1x8xf32, #tpu.memory_space<vmem>>, vector<1x8xf32>
    tpu.vector_store %arg7[%c0_14, %c0_15], %27 {strides = array<i32>} : memref<1x8xf32, #tpu.memory_space<vmem>>, vector<1x8xf32>,
    %c2_i32 = arith.constant 2 : i32
    %29 = arith.cmpi eq, %arg1, %c2_i32 : i32
    %c0_i32_16 = arith.constant 0 : i32
    %30 = arith.cmpi eq, %arg2, %c0_i32_16 : i32
    %31 = arith.andi %29, %30 : i1
    %32 = arith.extui %31 : i1 to i32
    %c0_i32_17 = arith.constant 0 : i32
    %33 = arith.cmpi ne, %32, %c0_i32_17 : i32
    scf.if %33 {
      %c0_18 = arith.constant 0 : index
      %c0_19 = arith.constant 0 : index
      %34 = vector.load %arg7[%c0_18, %c0_19] : memref<1x8xf32, #tpu.memory_space<vmem>>, vector<1x8xf32>
      %cst_20 = arith.constant dense<0.000000e+00> : vector<1xf32>
      %35 = vector.multi_reduction <add>, %34, %cst_20 [1] : vector<1x8xf32> to vector<1xf32>
      %36 = vector.shape_cast %35 : vector<1xf32> to vector<1x1xf32>
      %cst_21 = arith.constant 0.0416666679 : f32
      %37 = vector.broadcast %cst_21 : f32 to vector<1x1xf32>
      %38 = arith.mulf %36, %37 : vector<1x1xf32>
      %39 = vector.shape_cast %38 : vector<1x1xf32> to vector<1x1x1xf32>
      %40 = vector.shape_cast %39 : vector<1x1x1xf32> to vector<1x1x1xf32>
      %41 = vector.broadcast %40 : vector<1x1x1xf32> to vector<1x1x128xf32>
      %c0_22 = arith.constant 0 : index
      %c0_23 = arith.constant 0 : index
      %c0_24 = arith.constant 0 : index
      %42 = vector.load %arg6[%c0_22, %c0_23, %c0_24] : memref<1x1x128xf32, #tpu.memory_space<vmem>>, vector<1x1x128xf32>
      tpu.vector_store %arg6[%c0_22, %c0_23, %c0_24], %41 {strides = array<i32>} : memref<1x1x128xf32, #tpu.memory_space<vmem>>, vector<1x1x128xf32>,
    } else {
    }
    return
  }
  func.func @transform_0(%arg0: i32, %arg1: i32, %arg2: i32) -> (i32, i32, i32, i32) {
    %c0_i32 = arith.constant 0 : i32
    %c0_i32_0 = arith.constant 0 : i32
    return %arg1, %arg0, %arg2, %c0_i32 : i32, i32, i32, i32
  }
  func.func @transform_1(%arg0: i32, %arg1: i32, %arg2: i32) -> (i32, i32, i32) {
    %c0_i32 = arith.constant 0 : i32
    %c0_i32_0 = arith.constant 0 : i32
    %c0_i32_1 = arith.constant 0 : i32
    return %arg1, %c0_i32, %c0_i32_0 : i32, i32, i32
  }
  func.func @transform_2(%arg0: i32, %arg1: i32, %arg2: i32) -> i32 {
    %c0_i32 = arith.constant 0 : i32
    %c0_i32_0 = arith.constant 0 : i32
    return %c0_i32 : i32
  }
  func.func @transform_3(%arg0: i32, %arg1: i32, %arg2: i32) -> (i32, i32, i32) {
    %c0_i32 = arith.constant 0 : i32
    %c0_i32_0 = arith.constant 0 : i32
    %c0_i32_1 = arith.constant 0 : i32
    return %arg0, %c0_i32, %c0_i32_0 : i32, i32, i32
  }
}

</mosaic_0001>

<llo_original>
// kernel: tpu_custom_call.1
$region0: #{tpu_custom_call.1}
  #allocation0 [shape = 'u32[]', space=smem, size = 0x4, offset = 0x4, fixed_abs, tag = 'smem constant byte address 0x4 - core index']
  #allocation1 [shape = 'u32[144,128]{1,0:T(1,128)}', space=vmem, size = 0x12000, scoped, tag = 'internal scratch']
  #allocation2 [shape = 'f32[1,8]{1,0:T(1,128)}', space=vmem, size = 0x200, scoped, tag = 'scratch operand']
  %s0 = inlined_call_operand.vmem [shape: f32[3,2,8,32], index: 0, kind: input, shape index: {}]
  %s1 = inlined_call_operand.vmem [shape: f32[3,32,8], index: 1, kind: input, shape index: {}]
  %s2 = inlined_call_operand.vmem [shape: f32[3], index: 2, kind: input, shape index: {}]
  %s3 = inlined_call_operand.hbm [shape: f32[2,1,128], index: 3, kind: output, shape index: {}]
  %s4 = sld [smem:[#allocation0]]
  $region57: #{tpu_custom_call.1} parent=0
    _
  %s6 = ssub.s32 1, %s4
  %s7 = scalar_select 0, %s6, %s4
  $region1: #{tpu_custom_call.1} parent=0
    #allocation3 [shape = 'u8[512]{0}', space=smem, size = 0x200, scoped, tag = 'input window, operand 2, single buffered']
    #allocation4 [shape = 's32[2]{0}', space=sflag, size = 0x8, scoped, tag = 'scoped memory for tpu_custom_call.1']
    #allocation5 [shape = 's32[2]{0}', space=sflag, size = 0x8, scoped, tag = 'scoped memory for tpu_custom_call.1']
    #allocation6 [shape = 'u8[1024]{0}', space=vmem, size = 0x400, scoped, tag = 'output window, operand 0']
    %8 = vsyncpa [#allocation5], 0
    %9 = vsyncpa [#allocation4], 0
    %s10 = scalar_lea.sflag [#allocation4], 1
    %11 = vsyncpa %s10, 0
    loop: start=0, step=1, limit=8
    $region2: #{tpu_custom_call.1} parent=1 // loop_pre_header
      _
    $region3: #{tpu_custom_call.1} parent=1 // loop_header
      %s13 = sphi 0, %s17
      %p14 = scmp.ge.s32.totalorder %s13, 8
      %s20 = sphi 0, %s39
      %s21 = sphi 0, %s35
      %s22 = sphi 0, %s31
      %s23 = sphi 0, %s20
      %s24 = sphi 0, %s21
      %s25 = sphi 0, %s22
      %s26 = sphi 0, %s23
      %s27 = sphi 0, %s24
      %s28 = sphi 0, %s25
      %s46 = sphi 0, %s48
      %s49 = sphi 0, %s46
      %s50 = sphi 0, %s49
      %s66 = sphi 0, %s50
      %s72 = sphi 0, %s74
      %s75 = sphi 0, %s72
      %s76 = sphi 0, %s75
      %s92 = sphi 0, %s76
      %s96 = sphi 0, %s96
      %s98 = sphi 0, %s96
      %s99 = sphi 0, %s98
      %s113 = sphi 0, %s99
      %s119 = sphi 0, %s121
      %s122 = sphi 0, %s119
      %s123 = sphi 0, %s122
      %s139 = sphi 0, %s123
    $region4: #{tpu_custom_call.1} parent=1 // loop_header_branch
      %16 = sbr.rel (%p14) target = $region8
    $region5: #{tpu_custom_call.1} parent=1 // loop_body
      %s18 = ssub.s32 %s13, 1
      %s19 = ssub.s32 %s13, 2
      %s29 = sadd.s32 1, %s22
      %p30 = scmp.ge.s32.totalorder %s29, 1
      %s31 = scalar_select %p30, 0, %s29
      %s32 = sadd.s32 1, %s21
      %s33 = scalar_select %p30, %s32, %s21
      %p34 = scmp.ge.s32.totalorder %s33, 3
      %s35 = scalar_select %p34, 0, %s33
      %s36 = sadd.s32 1, %s20
      %s37 = scalar_select %p34, %s36, %s20
      %p38 = scmp.ge.s32.totalorder %s37, 2
      %s39 = scalar_select %p38, 0, %s37
      %s40 = ssub.s32 %s21, %s35
      %s41 = ssub.s32 %s20, %s39
      %s42 = sor.u32 %s40, %s41
      %s43 = ssub.s32 %s22, %s31
      %s44 = sor.u32 %s42, %s43
      %p45 = scmp.eq.s32.totalorder %s44, 0
      %s47 = sadd.s32 %s46, 1
      %s48 = scalar_select %p45, %s46, %s47
      %p51 = pneg %p45
      %p52 = scmp.eq.s32.totalorder %s13, 5
      %p53 = por %p51, %p52
      %p54 = scmp.ne.s32.totalorder %s46, %s49
      %p55 = scmp.eq.s32.totalorder %s13, 0
      %p56 = por %p54, %p55
      %p57 = scmp.ne.s32.totalorder %s46, %s49
      %p58 = scmp.eq.s32.totalorder %s18, 5
      %p59 = por %p57, %p58
      %p60 = scmp.ne.s32.totalorder %s49, %s50
      %p61 = scmp.eq.s32.totalorder %s18, 0
      %p62 = por %p60, %p61
      %p63 = scmp.ne.s32.totalorder %s49, %s50
      %p64 = scmp.eq.s32.totalorder %s19, 5
      %p65 = por %p63, %p64
      %p67 = scmp.ne.s32.totalorder %s50, %s66
      %p68 = scmp.eq.s32.totalorder %s19, 0
      %p69 = por %p67, %p68
      %s70 = ssub.s32 %s21, %s35
      %p71 = scmp.eq.s32.totalorder %s70, 0
      %s73 = sadd.s32 %s72, 1
      %s74 = scalar_select %p71, %s72, %s73
      %p77 = pneg %p71
      %p78 = scmp.eq.s32.totalorder %s13, 5
      %p79 = por %p77, %p78
      %p80 = scmp.ne.s32.totalorder %s72, %s75
      %p81 = scmp.eq.s32.totalorder %s13, 0
      %p82 = por %p80, %p81
      %p83 = scmp.ne.s32.totalorder %s72, %s75
      %p84 = scmp.eq.s32.totalorder %s18, 5
      %p85 = por %p83, %p84
      %p86 = scmp.ne.s32.totalorder %s75, %s76
      %p87 = scmp.eq.s32.totalorder %s18, 0
      %p88 = por %p86, %p87
      %p89 = scmp.ne.s32.totalorder %s75, %s76
      %p90 = scmp.eq.s32.totalorder %s19, 5
      %p91 = por %p89, %p90
      %p93 = scmp.ne.s32.totalorder %s76, %s92
      %p94 = scmp.eq.s32.totalorder %s19, 0
      %p95 = por %p93, %p94
      %s97 = sadd.s32 %s96, 1
      %p100 = scmp.eq.s32.totalorder %s13, 5
      %p101 = scmp.ne.s32.totalorder %s96, %s98
      %p102 = scmp.eq.s32.totalorder %s13, 0
      %p103 = por %p101, %p102
      %p104 = scmp.ne.s32.totalorder %s96, %s98
      %p105 = scmp.eq.s32.totalorder %s18, 5
      %p106 = por %p104, %p105
      %p107 = scmp.ne.s32.totalorder %s98, %s99
      %p108 = scmp.eq.s32.totalorder %s18, 0
      %p109 = por %p107, %p108
      %p110 = scmp.ne.s32.totalorder %s98, %s99
      %p111 = scmp.eq.s32.totalorder %s19, 5
      %p112 = por %p110, %p111
      %p114 = scmp.ne.s32.totalorder %s99, %s113
      %p115 = scmp.eq.s32.totalorder %s19, 0
      %p116 = por %p114, %p115
      %s117 = ssub.s32 %s20, %s39
      %p118 = scmp.eq.s32.totalorder %s117, 0
      %s120 = sadd.s32 %s119, 1
      %s121 = scalar_select %p118, %s119, %s120
      %p124 = pneg %p118
      %p125 = scmp.eq.s32.totalorder %s13, 5
      %p126 = por %p124, %p125
      %p127 = scmp.ne.s32.totalorder %s119, %s122
      %p128 = scmp.eq.s32.totalorder %s13, 0
      %p129 = por %p127, %p128
      %p130 = scmp.ne.s32.totalorder %s119, %s122
      %p131 = scmp.eq.s32.totalorder %s18, 5
      %p132 = por %p130, %p131
      %p133 = scmp.ne.s32.totalorder %s122, %s123
      %p134 = scmp.eq.s32.totalorder %s18, 0
      %p135 = por %p133, %p134
      %p136 = scmp.ne.s32.totalorder %s122, %s123
      %p137 = scmp.eq.s32.totalorder %s19, 5
      %p138 = por %p136, %p137
      %p140 = scmp.ne.s32.totalorder %s123, %s139
      %p141 = scmp.eq.s32.totalorder %s19, 0
      %p142 = por %p140, %p141
      %p143 = scmp.le.s32.totalorder 1, %s13
      %p144 = scmp.lt.s32.totalorder %s13, 7
      %p145 = pnand %p143, %p144
      %p146 = pneg %p145
      // Predicated region
      $region9: #{tpu_custom_call.1} parent=5 // pred_check
        _
      $region10: #{tpu_custom_call.1} parent=5 // pred_check_branch
        %148 = sbr.rel (%p145) target = $region12
      $region11: #{tpu_custom_call.1} parent=5 // pred_region
        %s149 = ssub.s32 %s13, 1
        // Predicated region
        $region13: #{tpu_custom_call.1} parent=11 // pred_check
          %p150 = pneg %p109
        $region14: #{tpu_custom_call.1} parent=11 // pred_check_branch
          %152 = sbr.rel (%p150) target = $region16
        $region15: #{tpu_custom_call.1} parent=11 // pred_region
          %s154 = ssub.s32 16, 16
          %155 = vsyncadd [#allocation5], %s154
          %s157 = sshll.u32 %s2, 4
          %s158 = int_to_ptr.vmem [resolvable:$true] %s157
          %160 = dma.vmem_to_smem %s158, 16, [#allocation3], [#allocation5]
        $region16: #{tpu_custom_call.1} parent=11 // pred_fallthru
          _
      $region12: #{tpu_custom_call.1} parent=5 // pred_fallthru
        _
      %p161 = scmp.lt.s32.totalorder %s13, 6
      // Predicated region
      $region17: #{tpu_custom_call.1} parent=5 // pred_check
        %p162 = pneg %p161
      $region18: #{tpu_custom_call.1} parent=5 // pred_check_branch
        %164 = sbr.rel (%p162) target = $region20
      $region19: #{tpu_custom_call.1} parent=5 // pred_region
        // Predicated region
        $region21: #{tpu_custom_call.1} parent=19 // pred_check
          %p165 = pneg %p56
        $region22: #{tpu_custom_call.1} parent=19 // pred_check_branch
          %167 = sbr.rel (%p165) target = $region24
        $region23: #{tpu_custom_call.1} parent=19 // pred_region
          %p168 = scmp.lt.s32.totalorder %s21, 2
          %s169 = scalar_select %p168, %s21, 2
          %p170 = scmp.lt.s32.totalorder %s20, 1
          %s171 = scalar_select %p170, %s20, 1
          %p172 = scmp.lt.s32.totalorder %s22, 0
          %s173 = scalar_select %p172, %s22, 0
          %s174 = sadd.s32 %s173, %s171
          %s175 = smul.addr %s169, 2
          %s176 = sadd.s32 %s174, %s175
          %s177 = smul.addr %s176, 8
          %s178 = scalar_lea.vmem %s0, %s177
        $region24: #{tpu_custom_call.1} parent=19 // pred_fallthru
          _
        // Predicated region
        $region25: #{tpu_custom_call.1} parent=19 // pred_check
          %p179 = pneg %p82
        $region26: #{tpu_custom_call.1} parent=19 // pred_check_branch
          %181 = sbr.rel (%p179) target = $region28
        $region27: #{tpu_custom_call.1} parent=19 // pred_region
          %p182 = scmp.lt.s32.totalorder %s21, 2
          %s183 = scalar_select %p182, %s21, 2
          %s184 = smul.addr %s183, 4
          %s185 = smul.addr %s184, 8
          %s186 = scalar_lea.vmem %s1, %s185
        $region28: #{tpu_custom_call.1} parent=19 // pred_fallthru
          _
      $region20: #{tpu_custom_call.1} parent=5 // pred_fallthru
        _
      %p187 = scmp.le.s32.totalorder 1, %s13
      %p188 = scmp.lt.s32.totalorder %s13, 7
      %p189 = pnand %p187, %p188
      %p190 = pneg %p189
      // Predicated region
      $region29: #{tpu_custom_call.1} parent=5 // pred_check
        _
      $region30: #{tpu_custom_call.1} parent=5 // pred_check_branch
        %192 = sbr.rel (%p189) target = $region32
      $region31: #{tpu_custom_call.1} parent=5 // pred_region
        %s193 = ssub.s32 %s13, 1
        // Predicated region
        $region33: #{tpu_custom_call.1} parent=31 // pred_check
          %p194 = pneg %p109
        $region34: #{tpu_custom_call.1} parent=31 // pred_check_branch
          %196 = sbr.rel (%p194) target = $region36
        $region35: #{tpu_custom_call.1} parent=31 // pred_region
          %197 = dma.done [#allocation5], 16
        $region36: #{tpu_custom_call.1} parent=31 // pred_fallthru
          _
        %198 = sfence
        %p199 = scmp.lt.s32.totalorder %s24, 2
        %s200 = scalar_select %p199, %s24, 2
        %p201 = scmp.lt.s32.totalorder %s23, 1
        %s202 = scalar_select %p201, %s23, 1
        %p203 = scmp.lt.s32.totalorder %s25, 0
        %s204 = scalar_select %p203, %s25, 0
        %s205 = sadd.s32 %s204, %s202
        %s206 = smul.addr %s200, 2
        %s207 = sadd.s32 %s205, %s206
        %s208 = smul.addr %s207, 8
        %s209 = scalar_lea.vmem %s0, %s208
        %p210 = pneg %p62
        %p211 = pneg %p59
        %p212 = scmp.lt.s32.totalorder %s24, 2
        %s213 = scalar_select %p212, %s24, 2
        %s214 = smul.addr %s213, 4
        %s215 = smul.addr %s214, 8
        %s216 = scalar_lea.vmem %s1, %s215
        %p217 = pneg %p88
        %p218 = pneg %p85
        %p219 = pneg %p109
        %p220 = pneg %p106
        %p221 = pneg %p135
        %p222 = pneg %p132
        %s223 = sand.u32 %s122, 1
        %s224 = scalar_lea.sflag [#allocation4], %s223
        %s225 = sand.u32 %s122, 1
        %s226 = scalar_lea.vmem [#allocation6], %s225
        %p227 = scmp.lt.s32.totalorder %s24, 2
        %s228 = scalar_select %p227, %s24, 2
        %p229 = scmp.lt.s32.totalorder %s23, 1
        %s230 = scalar_select %p229, %s23, 1
        %p231 = scmp.lt.s32.totalorder %s25, 0
        %s232 = scalar_select %p231, %s25, 0
        %s233 = sadd.s32 %s232, %s230
        %s234 = smul.addr %s228, 2
        %s235 = sadd.s32 %s233, %s234
        %s236 = smul.addr %s235, 8
        %s237 = scalar_lea.vmem %s0, %s236
        %p238 = scmp.lt.s32.totalorder %s24, 2
        %s239 = scalar_select %p238, %s24, 2
        %s240 = smul.addr %s239, 4
        %s241 = smul.addr %s240, 8
        %s242 = scalar_lea.vmem %s1, %s241
        %p243 = scmp.eq.s32.totalorder %s24, 0
        %p244 = scmp.eq.s32.totalorder %s25, 0
        %p245 = pnand %p243, %p244
        %p246 = pneg %p245
        // Predicated region
        $region37: #{tpu_custom_call.1} parent=31 // pred_check
          _
        $region38: #{tpu_custom_call.1} parent=31 // pred_check_branch
          %248 = sbr.rel (%p245) target = $region40
        $region39: #{tpu_custom_call.1} parent=31 // pred_region
          %vm249 = vcmask 57344
          %250 = vst.msk [vmem:[#allocation2] sm:$0x1] %vm249, 0.0
        $region40: #{tpu_custom_call.1} parent=31 // pred_fallthru
          _
        %v251 = vld [vmem:[%s237] sm:$0xff]
        %v252 = vld [vmem:[%s242] sm:$0xff]
        %v253 = vld [vmem:[%s242 + $0x8] sm:$0xff]
        %v254 = vld [vmem:[%s242 + $0x10] sm:$0xff]
        %v255 = vld [vmem:[%s242 + $0x18] sm:$0xff]
        %s256 = sld [smem:[#allocation3 + %s24]]
        %v257 = vstv %s256
        %vm258 = vcmask 261120
        %v260 = vsel %vm258, %v251, 0
        %262 = vmatprep.subr.mxu0 0.0
        %263 = vmatpush1.msra.mxu0 %v252
        %264 = vmatprep.subr.mxu0 0.0
        %265 = vmatpush1.msra.mxu0 %v253
        %266 = vmatprep.subr.mxu0 0.0
        %267 = vmatpush1.msra.mxu0 %v254
        %268 = vmatprep.subr.mxu0 0.0
        %269 = vmatpush1.msra.mxu0 %v255
        %270 = vmatprep.subr.mxu0 0.0
        %271 = vmatpush1.msra.mxu0 0.0
        %272 = vmatprep.subr.mxu0 0.0
        %273 = vmatpush1.msra.mxu0 0.0
        %274 = vmatprep.subr.mxu0 0.0
        %275 = vmatpush1.msra.mxu0 0.0
        %276 = vmatprep.subr.mxu0 0.0
        %277 = vmatpush1.msra.mxu0 0.0
        %278 = vmatprep.subr.mxu0 0.0
        %279 = vmatpush1.msra.mxu0 0.0
        %280 = vmatprep.subr.mxu0 0.0
        %281 = vmatpush1.msra.mxu0 0.0
        %282 = vmatprep.subr.mxu0 0.0
        %283 = vmatpush1.msra.mxu0 0.0
        %284 = vmatprep.subr.mxu0 0.0
        %285 = vmatpush1.msra.mxu0 0.0
        %286 = vmatprep.subr.mxu0 0.0
        %287 = vmatpush1.msra.mxu0 0.0
        %288 = vmatprep.subr.mxu0 0.0
        %289 = vmatpush1.msra.mxu0 0.0
        %290 = vmatprep.subr.mxu0 0.0
        %291 = vmatpush1.msra.mxu0 0.0
        %292 = vmatprep.subr.mxu0 0.0
        %293 = vmatpush1.msra.mxu0 0.0
        %294 = vmatprep.subr.mxu0 0.0
        %295 = vmatpush1.msra.mxu0 0.0
        %296 = vmatprep.subr.mxu0 0.0
        %297 = vmatpush1.msra.mxu0 0.0
        %298 = vmatprep.subr.mxu0 0.0
        %299 = vmatpush1.msra.mxu0 0.0
        %300 = vmatprep.subr.mxu0 0.0
        %301 = vmatpush1.msra.mxu0 0.0
        %302 = vmatprep.subr.mxu0 0.0
        %303 = vmatpush1.msra.mxu0 0.0
        %304 = vmatprep.subr.mxu0 0.0
        %305 = vmatpush1.msra.mxu0 0.0
        %306 = vmatprep.subr.mxu0 0.0
        %307 = vmatpush1.msra.mxu0 0.0
        %308 = vmatprep.subr.mxu0 0.0
        %309 = vmatpush1.msra.mxu0 0.0
        %310 = vmatprep.subr.mxu0 0.0
        %311 = vmatpush1.msra.mxu0 0.0
        %312 = vmatprep.subr.mxu0 0.0
        %313 = vmatpush1.msra.mxu0 0.0
        %314 = vmatprep.subr.mxu0 0.0
        %315 = vmatpush1.msra.mxu0 0.0
        %316 = vmatprep.subr.mxu0 0.0
        %317 = vmatpush1.msra.mxu0 0.0
        %318 = vmatprep.subr.mxu0 0.0
        %319 = vmatpush1.msra.mxu0 0.0
        %320 = vmatprep.subr.mxu0 0.0
        %321 = vmatpush1.msra.mxu0 0.0
        %322 = vmatprep.subr.mxu0 0.0
        %323 = vmatpush1.msra.mxu0 0.0
        %324 = vmatprep.subr.mxu0 0.0
        %325 = vmatpush1.msra.mxu0 0.0
        %326 = vmatprep.mubr.f32.mxu0 0.0
        %327 = vmatmul.mubr.f32.gmra.mrb[0].mxu0 %v260
        %v328 = vpop.f32.mrb[0].mxu0
        %v329 = vadd.f32 %v257, %v328
        %v330 = vpop.f32.mrb[0].mxu0
        %331 = vdwg.mxu0
        %v332 = vxor.u32 %v329, 2147483648
        %v333 = vmul.f32 %v332, 1.442695
        %v334 = vpow.pop %v333
        %v335 = vadd.f32 %v334, 1.0
        %v336 = vrcp.pop %v335
        %v337 = vmul.f32 1.0, %v336
        %v338 = vlaneseq
        %v339 = vand.u32 %v338, 127
        %vm340 = vcmp.eq.s32.totalorder %v339, 0
        %v341 = vsel %vm340, %v337, 0.0
        %v342 = vld [vmem:[#allocation2] sm:$0x1]
        %vm343 = vcmask 64512
        %v344 = vsel %vm343, %v341, 0.0
        %v345 = vrot.slane %v344, 4
        %v346 = vadd.f32 %v344, %v345
        %v347 = vrot.slane %v346, 2
        %v348 = vadd.f32 %v346, %v347
        %v349 = vrot.slane %v348, 1
        %v350 = vadd.f32 %v348, %v349
        %v351 = vadd.f32 %v342, %v350
        %vm352 = vcmask 57344
        %353 = vst.msk [vmem:[#allocation2] sm:$0x1] %vm352, %v351
        %p354 = scmp.eq.s32.totalorder %s24, 2
        %p355 = pnand %p354, %p244
        %p356 = pneg %p355
        // Predicated region
        $region41: #{tpu_custom_call.1} parent=31 // pred_check
          _
        $region42: #{tpu_custom_call.1} parent=31 // pred_check_branch
          %358 = sbr.rel (%p355) target = $region44
        $region43: #{tpu_custom_call.1} parent=31 // pred_region
          %v359 = vld [vmem:[#allocation2] sm:$0x1]
          %v360 = vsel %vm352, %v359, 0.0
          %361 = vadd.xlane.f32.xlu0 %v360
          %v362 = vpop.xlane.xlu0 %361
          %v363 = vmul.f32 %v362, 0.041666668
          %364 = vst [vmem:[%s226] sm:$0x1] %v363
        $region44: #{tpu_custom_call.1} parent=31 // pred_fallthru
          _
        %s365 = sand.u32 %s122, 1
        %s366 = scalar_lea.sflag [#allocation4], %s365
        %s367 = sand.u32 %s122, 1
        %s368 = scalar_lea.vmem [#allocation6], %s367
        // Predicated region
        $region45: #{tpu_custom_call.1} parent=31 // pred_check
          %p369 = pneg %p132
        $region46: #{tpu_custom_call.1} parent=31 // pred_check_branch
          %371 = sbr.rel (%p369) target = $region48
        $region47: #{tpu_custom_call.1} parent=31 // pred_region
          %s373 = ssub.s32 16, 16
          %374 = vsyncadd %s366, %s373
          %s375 = smul.addr %s23, 16
          %s376 = scalar_lea.hbm %s3, %s375
          %s378 = sshll.u32 %s368, 4
          %s379 = int_to_ptr.vmem [resolvable:$true] %s378
          %381 = dma.vmem_to_hbm [thread:$0]  %s379, 16, %s376, %s366
        $region48: #{tpu_custom_call.1} parent=31 // pred_fallthru
          _
      $region32: #{tpu_custom_call.1} parent=5 // pred_fallthru
        _
      %p382 = scmp.le.s32.totalorder 2, %s13
      // Predicated region
      $region49: #{tpu_custom_call.1} parent=5 // pred_check
        %p383 = pneg %p382
      $region50: #{tpu_custom_call.1} parent=5 // pred_check_branch
        %385 = sbr.rel (%p383) target = $region52
      $region51: #{tpu_custom_call.1} parent=5 // pred_region
        %s386 = ssub.s32 %s13, 2
        // Predicated region
        $region53: #{tpu_custom_call.1} parent=51 // pred_check
          %p387 = pneg %p138
        $region54: #{tpu_custom_call.1} parent=51 // pred_check_branch
          %389 = sbr.rel (%p387) target = $region56
        $region55: #{tpu_custom_call.1} parent=51 // pred_region
          %s390 = sand.u32 %s123, 1
          %s391 = scalar_lea.sflag [#allocation4], %s390
          %s392 = sand.u32 %s123, 1
          %s393 = scalar_lea.vmem [#allocation6], %s392
          %394 = dma.done %s391, 16
        $region56: #{tpu_custom_call.1} parent=51 // pred_fallthru
          _
      $region52: #{tpu_custom_call.1} parent=5 // pred_fallthru
        _
    $region6: #{tpu_custom_call.1} parent=1 // loop_footer
      %s17 = sadd.s32 1, %s13
    $region7: #{tpu_custom_call.1} parent=1 // loop_footer_branch
      %12 = sbr.rel target = $region3
    $region8: #{tpu_custom_call.1} parent=1 // loop_exit
      _
    %395 = vsyncpa [#allocation4], 1
    %s396 = scalar_lea.sflag [#allocation4], 1
    %397 = vsyncpa %s396, 1
    %398 = vsyncpa [#allocation5], 1
    %s399 = scalar_lea.sflag [#allocation5], 1
    %400 = vsyncpa %s399, 1

</llo_original>
